<compile_context>
chip_gen: v6e
topology: v6e:2x2x1
jax: 0.10.0
libtpu: 0.0.40
codegen_flags: <defaults>
</compile_context>

<pallas_src>
import numpy as np
import jax
import jax.numpy as jnp
from jax.experimental import pallas as pl
from jax.experimental.pallas import tpu as pltpu


def _round_up(x, m):
    return ((x + m - 1) // m) * m


def phobert_encoder_head(h4, assign, wdet, bdet, wctx, bctx, wcor, bcor,
                         *, batch_block=2, v_tile=2048, vmem_limit_bytes=None):
    """Fused PhoBertEncoder head.

    Returns lane-padded logits:
      detection : (B, Wp, Ep) f32   (real data in [:, :W, :E])
      correction: (B, Wp, Vp) bf16  (real data in [:, :W, :V])
    Production callers should keep the padded layout (slicing would re-stream the full tensor).
    """
    B, L, S, H = h4.shape
    _, W, _ = assign.shape
    E = wdet.shape[1]
    V = wcor.shape[1]

    BB = batch_block
    assert B % BB == 0, "batch_block must divide the batch size"
    Wp = _round_up(W, 8)            # sublane-aligned word axis -> unmasked full-slab stores
    Ep = _round_up(E, 128)          # lane-dense detection output
    Vp = _round_up(V, 128)          # lane-dense correction output (only 128-pad, no TV-pad)
    TV = min(v_tile, Vp)
    nV = pl.cdiv(Vp, TV)            # last tile may be partial (masked store on that tile only)

    # ---- host-side prep: 4-layer mean fused into the bf16 cast; zero-pad to lane/sublane dims.
    h_mean = jnp.mean(h4, axis=1).astype(jnp.bfloat16)                       # (B, S, H)
    assign_p = jnp.pad(assign, ((0, 0), (0, Wp - W), (0, 0))).astype(jnp.bfloat16)

    wdet_p = jnp.pad(wdet, ((0, 0), (0, Ep - E))).astype(jnp.bfloat16)
    # -1e30 in padded logit columns => exp() underflows to 0 in f32, softmax over real cols exact.
    bdet_p = jnp.full((1, Ep), -1e30, jnp.float32).at[:, :E].set(bdet.reshape(1, E))
    wctx_p = jnp.pad(wctx, ((0, Ep - E), (0, 0))).astype(jnp.bfloat16)
    bctx_p = bctx.reshape(1, H).astype(jnp.float32)
    wcor_p = jnp.pad(wcor, ((0, 0), (0, Vp - V))).astype(jnp.bfloat16)
    bcor_p = jnp.pad(bcor.reshape(1, V), ((0, 0), (0, Vp - V))).astype(jnp.float32)

    # ---------------- kernel 1: merge + detection + softmax + context + residual ----------------
    def head_kernel(h_ref, a_ref, wdet_ref, bdet_ref, wctx_ref, bctx_ref,
                    det_out_ref, slab_out_ref):
        # subword->word merge on the MXU (batched), f32 accumulation.
        merged = jnp.einsum('bws,bsh->bwh', a_ref[...], h_ref[...],
                            preferred_element_type=jnp.float32)              # (BB, Wp, H) f32
        m2 = merged.reshape(BB * Wp, H)                                      # one big MXU slab

        # detection head.  NOTE: det math must stay f32 (padded -1e30 bias + softmax).
        det = jnp.dot(m2.astype(jnp.bfloat16), wdet_ref[...],
                      preferred_element_type=jnp.float32) + bdet_ref[...]    # (BB*Wp, Ep) f32

        # detection_context_layer = Softmax(-1) -> Linear(E, H); exact divide (probs feed ctx).
        mx = jnp.max(det, axis=-1, keepdims=True)
        e = jnp.exp(det - mx)
        p = e / jnp.sum(e, axis=-1, keepdims=True)
        ctx = jnp.dot(p.astype(jnp.bfloat16), wctx_ref[...],
                      preferred_element_type=jnp.float32) + bctx_ref[...]    # (BB*Wp, H) f32

        out = m2 + ctx                                                       # residual, f32

        # single lane-dense, sublane-aligned slab stores (no per-bb row slicing).
        det_out_ref[...] = det.reshape(BB, Wp, Ep)
        slab_out_ref[...] = out.reshape(BB, Wp, H).astype(jnp.bfloat16)

    det_p, slab = pl.pallas_call(
        head_kernel,
        out_shape=(jax.ShapeDtypeStruct((B, Wp, Ep), jnp.float32),
                   jax.ShapeDtypeStruct((B, Wp, H), jnp.bfloat16)),
        grid_spec=pltpu.PrefetchScalarGridSpec(
            num_scalar_prefetch=0,
            grid=(B // BB,),
            in_specs=[
                pl.BlockSpec((BB, S, H), lambda bi: (bi, 0, 0)),
                pl.BlockSpec((BB, Wp, S), lambda bi: (bi, 0, 0)),
                pl.BlockSpec((H, Ep), lambda bi: (0, 0)),
                pl.BlockSpec((1, Ep), lambda bi: (0, 0)),
                pl.BlockSpec((Ep, H), lambda bi: (0, 0)),
                pl.BlockSpec((1, H), lambda bi: (0, 0)),
            ],
            out_specs=[
                pl.BlockSpec((BB, Wp, Ep), lambda bi: (bi, 0, 0)),
                pl.BlockSpec((BB, Wp, H), lambda bi: (bi, 0, 0)),
            ],
        ),
        compiler_params=pltpu.CompilerParams(
            dimension_semantics=("parallel",),
            vmem_limit_bytes=vmem_limit_bytes),
    )(h_mean, assign_p, wdet_p, bdet_p, wctx_p, bctx_p)

    # ---------------- kernel 2: correction Linear, wcor-resident vocab stream ----------------
    # Grid = (nV, B//BB): vocab tile index is the OUTER axis, so each (H, TV) wcor tile is DMA'd
    # once and stays resident across the inner batch-block sweep (only the tiny bf16 slab streams).
    def correction_kernel(slab_ref, wcor_ref, bcor_ref, cor_out_ref):
        slab2 = slab_ref[...].reshape(BB * Wp, H)                            # bf16, no per-step cast
        cor = jnp.dot(slab2, wcor_ref[...],
                      preferred_element_type=jnp.float32) + bcor_ref[...]    # (BB*Wp, TV) f32
        cor_out_ref[...] = cor.reshape(BB, Wp, TV).astype(jnp.bfloat16)

    cor_p = pl.pallas_call(
        correction_kernel,
        out_shape=jax.ShapeDtypeStruct((B, Wp, Vp), jnp.bfloat16),
        grid_spec=pltpu.PrefetchScalarGridSpec(
            num_scalar_prefetch=0,
            grid=(nV, B // BB),
            in_specs=[
                pl.BlockSpec((BB, Wp, H), lambda vj, bi: (bi, 0, 0)),
                pl.BlockSpec((H, TV), lambda vj, bi: (0, vj)),     # resident across the bi sweep
                pl.BlockSpec((1, TV), lambda vj, bi: (0, vj)),
            ],
            out_specs=pl.BlockSpec((BB, Wp, TV), lambda vj, bi: (bi, 0, vj)),
        ),
        compiler_params=pltpu.CompilerParams(
            dimension_semantics=("parallel", "arbitrary"),
            vmem_limit_bytes=vmem_limit_bytes),
    )(slab, wcor_p, bcor_p)

    return det_p, cor_p


def build_assignment(batch_splits, B, W, S):
    """Word<-subword assignment matrix reproducing merge_embedding(mode='add')."""
    a = np.zeros((B, W, S), dtype=np.float32)
    for b, splits in enumerate(batch_splits):
        off = 1  # skip CLS token (sequence_embedding[1 : sum(split)+1])
        for w, c in enumerate(splits):
            a[b, w, off:off + c] = 1.0
            off += c
    return jnp.asarray(a)


def reference(h4, assign, wdet, bdet, wctx, bctx, wcor, bcor):
    mean_h = jnp.mean(h4, axis=1)                         # (B, S, H)
    merged = jnp.einsum('bws,bsh->bwh', assign, mean_h)   # (B, W, H)
    det = merged @ wdet + bdet
    p = jax.nn.softmax(det, axis=-1)
    ctx = p @ wctx + bctx
    out = merged + ctx
    cor = out @ wcor + bcor
    return det, cor


if __name__ == "__main__":
    # Small, forward-consistent shapes (V > 128 so the vocab-tiling path is exercised; B=4 so the
    # batch-block axis has 2 steps).  Production: H=768, V~50k, W~192, BB>=4, TV~2048-4096.
    B = 4          # batch
    S = 16         # subword sequence length (BERT output length)
    H = 32         # d_hid (hidden size; 768 in production -> lane-dense there)
    E = 8          # n_labels_error
    V = 200        # n_words (correction vocab) -> padded to 256, 2 vocab tiles of 128
    L = 4          # last-4 hidden layers

    # batch_splits: number of subwords per word for each sequence (sum <= S - 2).
    batch_splits = [[2, 1, 3, 1, 2],
                    [1, 2, 2, 1, 1, 3],
                    [3, 2, 1, 1],
                    [1, 1, 2, 2, 1, 1]]
    W = max(len(s) for s in batch_splits)   # 6
    assign = build_assignment(batch_splits, B, W, S)

    key = jax.random.PRNGKey(0)
    k_h, k_wd, k_bd, k_wc, k_bc, k_wr, k_br = jax.random.split(key, 7)

    # Synthetic last-4 hidden states of the (frozen) PhoBERT backbone.
    h4 = jax.random.normal(k_h, (B, L, S, H), dtype=jnp.float32)

    # Deterministic parameter init (shapes from the module __init__).
    scale = 0.02
    wdet = scale * jax.random.normal(k_wd, (H, E), dtype=jnp.float32)   # detection
    bdet = scale * jax.random.normal(k_bd, (E,), dtype=jnp.float32)
    wctx = scale * jax.random.normal(k_wc, (E, H), dtype=jnp.float32)   # detection_context_layer[1]
    bctx = scale * jax.random.normal(k_bc, (H,), dtype=jnp.float32)
    wcor = scale * jax.random.normal(k_wr, (H, V), dtype=jnp.float32)   # correction
    bcor = scale * jax.random.normal(k_br, (V,), dtype=jnp.float32)

    det_pad, cor_pad = phobert_encoder_head(h4, assign, wdet, bdet,
                                            wctx, bctx, wcor, bcor,
                                            batch_block=2, v_tile=128)
    jax.block_until_ready((det_pad, cor_pad))

    det_ref, cor_ref = reference(h4, assign, wdet, bdet, wctx, bctx, wcor, bcor)
    # Strip the lane/sublane padding only for the test comparison (production keeps it padded).
    det_out = np.asarray(det_pad[:, :W, :E])
    cor_out = np.asarray(cor_pad[:, :W, :V].astype(jnp.float32))
    # bf16 matmul operands + bf16 correction output -> loosened tolerance vs. the f32 reference.
    np.testing.assert_allclose(det_out, np.asarray(det_ref), rtol=3e-2, atol=3e-2)
    np.testing.assert_allclose(cor_out, np.asarray(cor_ref), rtol=3e-2, atol=3e-2)
    print("KERNEL_OK")
</pallas_src>

<mosaic_0001>
module attributes {stable_mosaic.version = 11 : i64} {
  func.func @head_kernel(%arg0: i32, %arg1: memref<2x16x32xbf16, #tpu.memory_space<vmem>>, %arg2: memref<2x8x16xbf16, #tpu.memory_space<vmem>>, %arg3: memref<32x128xbf16, #tpu.memory_space<vmem>>, %arg4: memref<1x128xf32, #tpu.memory_space<vmem>>, %arg5: memref<128x32xbf16, #tpu.memory_space<vmem>>, %arg6: memref<1x32xf32, #tpu.memory_space<vmem>>, %arg7: memref<2x8x128xf32, #tpu.memory_space<vmem>>, %arg8: memref<2x8x32xbf16, #tpu.memory_space<vmem>>) attributes {dimension_semantics = [#tpu.dimension_semantics<parallel>], iteration_bounds = array<i64: 2>, scalar_prefetch = 0 : i64, scratch_operands = 0 : i64, tpu.core_type = #tpu.core_type<tc>, window_params = [{transform_indices = @transform_0, window_bounds = array<i64: 2, 16, 32>}, {transform_indices = @transform_1, window_bounds = array<i64: 2, 8, 16>}, {pipeline_mode = #tpu.pipeline_mode<synchronous>, transform_indices = @transform_2, window_bounds = array<i64: 32, 128>}, {pipeline_mode = #tpu.pipeline_mode<synchronous>, transform_indices = @transform_3, window_bounds = array<i64: 1, 128>}, {pipeline_mode = #tpu.pipeline_mode<synchronous>, transform_indices = @transform_4, window_bounds = array<i64: 128, 32>}, {pipeline_mode = #tpu.pipeline_mode<synchronous>, transform_indices = @transform_5, window_bounds = array<i64: 1, 32>}, {transform_indices = @transform_6, window_bounds = array<i64: 2, 8, 128>}, {transform_indices = @transform_7, window_bounds = array<i64: 2, 8, 32>}]} {
    %c0 = arith.constant 0 : index
    %c0_0 = arith.constant 0 : index
    %c0_1 = arith.constant 0 : index
    %0 = vector.load %arg2[%c0, %c0_0, %c0_1] : memref<2x8x16xbf16, #tpu.memory_space<vmem>>, vector<2x8x16xbf16>
    %c0_2 = arith.constant 0 : index
    %c0_3 = arith.constant 0 : index
    %c0_4 = arith.constant 0 : index
    %1 = vector.load %arg1[%c0_2, %c0_3, %c0_4] : memref<2x16x32xbf16, #tpu.memory_space<vmem>>, vector<2x16x32xbf16>
    "tpu.trace_start"() <{level = 10 : i32, message = "bws,bsh->bwh"}> : () -> ()
    %cst = arith.constant dense<0.000000e+00> : vector<2x8x32xf32>
    %2 = tpu.matmul %0, %1, %cst {dimension_numbers = #tpu.dot_dimension_numbers<[2], [1], [1], [2], [0, 0, 0, 1, 1, 2], [0], [0]>} : vector<2x8x16xbf16>, vector<2x16x32xbf16>, vector<2x8x32xf32> -> vector<2x8x32xf32>
    "tpu.trace_stop"() : () -> ()
    %3 = vector.shape_cast %2 : vector<2x8x32xf32> to vector<16x32xf32>
    %4 = arith.truncf %3 : vector<16x32xf32> to vector<16x32xbf16>
    %c0_5 = arith.constant 0 : index
    %c0_6 = arith.constant 0 : index
    %5 = vector.load %arg3[%c0_5, %c0_6] : memref<32x128xbf16, #tpu.memory_space<vmem>>, vector<32x128xbf16>
    %cst_7 = arith.constant dense<0.000000e+00> : vector<16x128xf32>
    %6 = tpu.matmul %4, %5, %cst_7 {dimension_numbers = #tpu.dot_dimension_numbers<[1], [0], [0], [1], [0, 0, 1, 1], [], []>} : vector<16x32xbf16>, vector<32x128xbf16>, vector<16x128xf32> -> vector<16x128xf32>
    %c0_8 = arith.constant 0 : index
    %c0_9 = arith.constant 0 : index
    %7 = vector.load %arg4[%c0_8, %c0_9] : memref<1x128xf32, #tpu.memory_space<vmem>>, vector<1x128xf32>
    %8 = vector.broadcast %7 : vector<1x128xf32> to vector<16x128xf32>
    %9 = arith.addf %6, %8 : vector<16x128xf32>
    %cst_10 = arith.constant dense<0xFF800000> : vector<16xf32>
    %10 = vector.multi_reduction <maximumf>, %9, %cst_10 [1] : vector<16x128xf32> to vector<16xf32>
    %11 = vector.shape_cast %10 : vector<16xf32> to vector<16x1xf32>
    %12 = vector.broadcast %11 : vector<16x1xf32> to vector<16x128xf32>
    %13 = arith.subf %9, %12 : vector<16x128xf32>
    %14 = math.exp %13 : vector<16x128xf32>
    %cst_11 = arith.constant dense<0.000000e+00> : vector<16xf32>
    %15 = vector.multi_reduction <add>, %14, %cst_11 [1] : vector<16x128xf32> to vector<16xf32>
    %16 = vector.shape_cast %15 : vector<16xf32> to vector<16x1xf32>
    %17 = vector.broadcast %16 : vector<16x1xf32> to vector<16x128xf32>
    %18 = arith.divf %14, %17 : vector<16x128xf32>
    %19 = arith.truncf %18 : vector<16x128xf32> to vector<16x128xbf16>
    %c0_12 = arith.constant 0 : index
    %c0_13 = arith.constant 0 : index
    %20 = vector.load %arg5[%c0_12, %c0_13] : memref<128x32xbf16, #tpu.memory_space<vmem>>, vector<128x32xbf16>
    %cst_14 = arith.constant dense<0.000000e+00> : vector<16x32xf32>
    %21 = tpu.matmul %19, %20, %cst_14 {dimension_numbers = #tpu.dot_dimension_numbers<[1], [0], [0], [1], [0, 0, 1, 1], [], []>} : vector<16x128xbf16>, vector<128x32xbf16>, vector<16x32xf32> -> vector<16x32xf32>
    %c0_15 = arith.constant 0 : index
    %c0_16 = arith.constant 0 : index
    %22 = vector.load %arg6[%c0_15, %c0_16] : memref<1x32xf32, #tpu.memory_space<vmem>>, vector<1x32xf32>
    %23 = vector.broadcast %22 : vector<1x32xf32> to vector<16x32xf32>
    %24 = arith.addf %21, %23 : vector<16x32xf32>
    %25 = arith.addf %3, %24 : vector<16x32xf32>
    %26 = vector.shape_cast %9 : vector<16x128xf32> to vector<2x8x128xf32>
    %c0_17 = arith.constant 0 : index
    %c0_18 = arith.constant 0 : index
    %c0_19 = arith.constant 0 : index
    %27 = vector.load %arg7[%c0_17, %c0_18, %c0_19] : memref<2x8x128xf32, #tpu.memory_space<vmem>>, vector<2x8x128xf32>
    tpu.vector_store %arg7[%c0_17, %c0_18, %c0_19], %26 {strides = array<i32>} : memref<2x8x128xf32, #tpu.memory_space<vmem>>, vector<2x8x128xf32>,
    %28 = vector.shape_cast %25 : vector<16x32xf32> to vector<2x8x32xf32>
    %29 = arith.truncf %28 : vector<2x8x32xf32> to vector<2x8x32xbf16>
    %c0_20 = arith.constant 0 : index
    %c0_21 = arith.constant 0 : index
    %c0_22 = arith.constant 0 : index
    %30 = vector.load %arg8[%c0_20, %c0_21, %c0_22] : memref<2x8x32xbf16, #tpu.memory_space<vmem>>, vector<2x8x32xbf16>
    tpu.vector_store %arg8[%c0_20, %c0_21, %c0_22], %29 {strides = array<i32>} : memref<2x8x32xbf16, #tpu.memory_space<vmem>>, vector<2x8x32xbf16>,
    return
  }
  func.func @transform_0(%arg0: i32) -> (i32, i32, i32) {
    %c0_i32 = arith.constant 0 : i32
    %c0_i32_0 = arith.constant 0 : i32
    %c0_i32_1 = arith.constant 0 : i32
    return %arg0, %c0_i32, %c0_i32_0 : i32, i32, i32
  }
  func.func @transform_1(%arg0: i32) -> (i32, i32, i32) {
    %c0_i32 = arith.constant 0 : i32
    %c0_i32_0 = arith.constant 0 : i32
    %c0_i32_1 = arith.constant 0 : i32
    return %arg0, %c0_i32, %c0_i32_0 : i32, i32, i32
  }
  func.func @transform_2(%arg0: i32) -> (i32, i32) {
    %c0_i32 = arith.constant 0 : i32
    %c0_i32_0 = arith.constant 0 : i32
    %c0_i32_1 = arith.constant 0 : i32
    return %c0_i32, %c0_i32_0 : i32, i32
  }
  func.func @transform_3(%arg0: i32) -> (i32, i32) {
    %c0_i32 = arith.constant 0 : i32
    %c0_i32_0 = arith.constant 0 : i32
    %c0_i32_1 = arith.constant 0 : i32
    return %c0_i32, %c0_i32_0 : i32, i32
  }
  func.func @transform_4(%arg0: i32) -> (i32, i32) {
    %c0_i32 = arith.constant 0 : i32
    %c0_i32_0 = arith.constant 0 : i32
    %c0_i32_1 = arith.constant 0 : i32
    return %c0_i32, %c0_i32_0 : i32, i32
  }
  func.func @transform_5(%arg0: i32) -> (i32, i32) {
    %c0_i32 = arith.constant 0 : i32
    %c0_i32_0 = arith.constant 0 : i32
    %c0_i32_1 = arith.constant 0 : i32
    return %c0_i32, %c0_i32_0 : i32, i32
  }
  func.func @transform_6(%arg0: i32) -> (i32, i32, i32) {
    %c0_i32 = arith.constant 0 : i32
    %c0_i32_0 = arith.constant 0 : i32
    %c0_i32_1 = arith.constant 0 : i32
    return %arg0, %c0_i32, %c0_i32_0 : i32, i32, i32
  }
  func.func @transform_7(%arg0: i32) -> (i32, i32, i32) {
    %c0_i32 = arith.constant 0 : i32
    %c0_i32_0 = arith.constant 0 : i32
    %c0_i32_1 = arith.constant 0 : i32
    return %arg0, %c0_i32, %c0_i32_0 : i32, i32, i32
  }
}

</mosaic_0001>

<llo_original>
// kernel: tpu_custom_call.1
$region0: #{tpu_custom_call.1}
  #allocation0 [shape = 'u32[]', space=smem, size = 0x4, offset = 0x4, fixed_abs, tag = 'smem constant byte address 0x4 - core index']
  #allocation1 [shape = 'u32[144,128]{1,0:T(1,128)}', space=vmem, size = 0x12000, scoped, tag = 'internal scratch']
  %s0 = inlined_call_operand.vmem [shape: bf16[4,16,32], index: 0, kind: input, shape index: {}]
  %s1 = inlined_call_operand.vmem [shape: bf16[4,8,16], index: 1, kind: input, shape index: {}]
  %s2 = inlined_call_operand.vmem [shape: bf16[32,128], index: 2, kind: input, shape index: {}]
  %s3 = inlined_call_operand.vmem [shape: f32[1,128], index: 3, kind: input, shape index: {}]
  %s4 = inlined_call_operand.vmem [shape: bf16[128,32], index: 4, kind: input, shape index: {}]
  %s5 = inlined_call_operand.vmem [shape: f32[1,32], index: 5, kind: input, shape index: {}]
  %s6 = inlined_call_operand.hbm [shape: f32[4,8,128], index: 6, kind: output, shape index: {0}]
  %s7 = inlined_call_operand.hbm [shape: bf16[4,8,32], index: 7, kind: output, shape index: {1}]
  %8 = xla_tuple %s6, %s7
  %s9 = sld [smem:[#allocation0]]
  $region65: #{tpu_custom_call.1} parent=0
    _
  %s11 = ssub.s32 1, %s9
  %s12 = scalar_select 0, %s11, %s9
  $region1: #{tpu_custom_call.1} parent=0
    #allocation2 [shape = 'u8[16384]{0}', space=vmem, size = 0x4000, scoped, tag = 'output window, operand 0']
    #allocation3 [shape = 's32[2]{0}', space=sflag, size = 0x8, scoped, tag = 'scoped memory for tpu_custom_call.1']
    #allocation4 [shape = 'u8[8192]{0}', space=vmem, size = 0x2000, scoped, tag = 'output window, operand 1']
    #allocation5 [shape = 's32[2]{0}', space=sflag, size = 0x8, scoped, tag = 'scoped memory for tpu_custom_call.1']
    %13 = vsyncpa [#allocation3], 0
    %s14 = scalar_lea.sflag [#allocation3], 1
    %15 = vsyncpa %s14, 0
    %16 = vsyncpa [#allocation5], 0
    %s17 = scalar_lea.sflag [#allocation5], 1
    %18 = vsyncpa %s17, 0
    loop: start=0, step=1, limit=4
    $region2: #{tpu_custom_call.1} parent=1 // loop_pre_header
      _
    $region3: #{tpu_custom_call.1} parent=1 // loop_header
      %s20 = sphi 0, %s24
      %p21 = scmp.ge.s32.totalorder %s20, 4
      %s30 = sphi 0, %s32
      %s33 = sphi 0, %s30
      %s34 = sphi 0, %s33
      %s50 = sphi 0, %s34
      %s56 = sphi 0, %s58
      %s59 = sphi 0, %s56
      %s60 = sphi 0, %s59
      %s76 = sphi 0, %s60
      %s80 = sphi 0, %s80
      %s82 = sphi 0, %s80
      %s83 = sphi 0, %s82
      %s97 = sphi 0, %s83
      %s101 = sphi 0, %s101
      %s103 = sphi 0, %s101
      %s104 = sphi 0, %s103
      %s118 = sphi 0, %s104
      %s122 = sphi 0, %s122
      %s124 = sphi 0, %s122
      %s125 = sphi 0, %s124
      %s139 = sphi 0, %s125
      %s143 = sphi 0, %s143
      %s145 = sphi 0, %s143
      %s146 = sphi 0, %s145
      %s160 = sphi 0, %s146
      %s166 = sphi 0, %s168
      %s169 = sphi 0, %s166
      %s170 = sphi 0, %s169
      %s186 = sphi 0, %s170
      %s192 = sphi 0, %s194
      %s195 = sphi 0, %s192
      %s196 = sphi 0, %s195
      %s212 = sphi 0, %s196
    $region4: #{tpu_custom_call.1} parent=1 // loop_header_branch
      %23 = sbr.rel (%p21) target = $region8
    $region5: #{tpu_custom_call.1} parent=1 // loop_body
      %s25 = ssub.s32 %s20, 1
      %s26 = ssub.s32 %s20, 2
      %s27 = sadd.s32 %s20, 1
      %s28 = ssub.s32 %s20, %s27
      %p29 = scmp.eq.s32.totalorder %s28, 0
      %s31 = sadd.s32 %s30, 1
      %s32 = scalar_select %p29, %s30, %s31
      %p35 = pneg %p29
      %p36 = scmp.eq.s32.totalorder %s20, 1
      %p37 = por %p35, %p36
      %p38 = scmp.ne.s32.totalorder %s30, %s33
      %p39 = scmp.eq.s32.totalorder %s20, 0
      %p40 = por %p38, %p39
      %p41 = scmp.ne.s32.totalorder %s30, %s33
      %p42 = scmp.eq.s32.totalorder %s25, 1
      %p43 = por %p41, %p42
      %p44 = scmp.ne.s32.totalorder %s33, %s34
      %p45 = scmp.eq.s32.totalorder %s25, 0
      %p46 = por %p44, %p45
      %p47 = scmp.ne.s32.totalorder %s33, %s34
      %p48 = scmp.eq.s32.totalorder %s26, 1
      %p49 = por %p47, %p48
      %p51 = scmp.ne.s32.totalorder %s34, %s50
      %p52 = scmp.eq.s32.totalorder %s26, 0
      %p53 = por %p51, %p52
      %s54 = ssub.s32 %s20, %s27
      %p55 = scmp.eq.s32.totalorder %s54, 0
      %s57 = sadd.s32 %s56, 1
      %s58 = scalar_select %p55, %s56, %s57
      %p61 = pneg %p55
      %p62 = scmp.eq.s32.totalorder %s20, 1
      %p63 = por %p61, %p62
      %p64 = scmp.ne.s32.totalorder %s56, %s59
      %p65 = scmp.eq.s32.totalorder %s20, 0
      %p66 = por %p64, %p65
      %p67 = scmp.ne.s32.totalorder %s56, %s59
      %p68 = scmp.eq.s32.totalorder %s25, 1
      %p69 = por %p67, %p68
      %p70 = scmp.ne.s32.totalorder %s59, %s60
      %p71 = scmp.eq.s32.totalorder %s25, 0
      %p72 = por %p70, %p71
      %p73 = scmp.ne.s32.totalorder %s59, %s60
      %p74 = scmp.eq.s32.totalorder %s26, 1
      %p75 = por %p73, %p74
      %p77 = scmp.ne.s32.totalorder %s60, %s76
      %p78 = scmp.eq.s32.totalorder %s26, 0
      %p79 = por %p77, %p78
      %s81 = sadd.s32 %s80, 1
      %p84 = scmp.eq.s32.totalorder %s20, 1
      %p85 = scmp.ne.s32.totalorder %s80, %s82
      %p86 = scmp.eq.s32.totalorder %s20, 0
      %p87 = por %p85, %p86
      %p88 = scmp.ne.s32.totalorder %s80, %s82
      %p89 = scmp.eq.s32.totalorder %s25, 1
      %p90 = por %p88, %p89
      %p91 = scmp.ne.s32.totalorder %s82, %s83
      %p92 = scmp.eq.s32.totalorder %s25, 0
      %p93 = por %p91, %p92
      %p94 = scmp.ne.s32.totalorder %s82, %s83
      %p95 = scmp.eq.s32.totalorder %s26, 1
      %p96 = por %p94, %p95
      %p98 = scmp.ne.s32.totalorder %s83, %s97
      %p99 = scmp.eq.s32.totalorder %s26, 0
      %p100 = por %p98, %p99
      %s102 = sadd.s32 %s101, 1
      %p105 = scmp.eq.s32.totalorder %s20, 1
      %p106 = scmp.ne.s32.totalorder %s101, %s103
      %p107 = scmp.eq.s32.totalorder %s20, 0
      %p108 = por %p106, %p107
      %p109 = scmp.ne.s32.totalorder %s101, %s103
      %p110 = scmp.eq.s32.totalorder %s25, 1
      %p111 = por %p109, %p110
      %p112 = scmp.ne.s32.totalorder %s103, %s104
      %p113 = scmp.eq.s32.totalorder %s25, 0
      %p114 = por %p112, %p113
      %p115 = scmp.ne.s32.totalorder %s103, %s104
      %p116 = scmp.eq.s32.totalorder %s26, 1
      %p117 = por %p115, %p116
      %p119 = scmp.ne.s32.totalorder %s104, %s118
      %p120 = scmp.eq.s32.totalorder %s26, 0
      %p121 = por %p119, %p120
      %s123 = sadd.s32 %s122, 1
      %p126 = scmp.eq.s32.totalorder %s20, 1
      %p127 = scmp.ne.s32.totalorder %s122, %s124
      %p128 = scmp.eq.s32.totalorder %s20, 0
      %p129 = por %p127, %p128
      %p130 = scmp.ne.s32.totalorder %s122, %s124
      %p131 = scmp.eq.s32.totalorder %s25, 1
      %p132 = por %p130, %p131
      %p133 = scmp.ne.s32.totalorder %s124, %s125
      %p134 = scmp.eq.s32.totalorder %s25, 0
      %p135 = por %p133, %p134
      %p136 = scmp.ne.s32.totalorder %s124, %s125
      %p137 = scmp.eq.s32.totalorder %s26, 1
      %p138 = por %p136, %p137
      %p140 = scmp.ne.s32.totalorder %s125, %s139
      %p141 = scmp.eq.s32.totalorder %s26, 0
      %p142 = por %p140, %p141
      %s144 = sadd.s32 %s143, 1
      %p147 = scmp.eq.s32.totalorder %s20, 1
      %p148 = scmp.ne.s32.totalorder %s143, %s145
      %p149 = scmp.eq.s32.totalorder %s20, 0
      %p150 = por %p148, %p149
      %p151 = scmp.ne.s32.totalorder %s143, %s145
      %p152 = scmp.eq.s32.totalorder %s25, 1
      %p153 = por %p151, %p152
      %p154 = scmp.ne.s32.totalorder %s145, %s146
      %p155 = scmp.eq.s32.totalorder %s25, 0
      %p156 = por %p154, %p155
      %p157 = scmp.ne.s32.totalorder %s145, %s146
      %p158 = scmp.eq.s32.totalorder %s26, 1
      %p159 = por %p157, %p158
      %p161 = scmp.ne.s32.totalorder %s146, %s160
      %p162 = scmp.eq.s32.totalorder %s26, 0
      %p163 = por %p161, %p162
      %s164 = ssub.s32 %s20, %s27
      %p165 = scmp.eq.s32.totalorder %s164, 0
      %s167 = sadd.s32 %s166, 1
      %s168 = scalar_select %p165, %s166, %s167
      %p171 = pneg %p165
      %p172 = scmp.eq.s32.totalorder %s20, 1
      %p173 = por %p171, %p172
      %p174 = scmp.ne.s32.totalorder %s166, %s169
      %p175 = scmp.eq.s32.totalorder %s20, 0
      %p176 = por %p174, %p175
      %p177 = scmp.ne.s32.totalorder %s166, %s169
      %p178 = scmp.eq.s32.totalorder %s25, 1
      %p179 = por %p177, %p178
      %p180 = scmp.ne.s32.totalorder %s169, %s170
      %p181 = scmp.eq.s32.totalorder %s25, 0
      %p182 = por %p180, %p181
      %p183 = scmp.ne.s32.totalorder %s169, %s170
      %p184 = scmp.eq.s32.totalorder %s26, 1
      %p185 = por %p183, %p184
      %p187 = scmp.ne.s32.totalorder %s170, %s186
      %p188 = scmp.eq.s32.totalorder %s26, 0
      %p189 = por %p187, %p188
      %s190 = ssub.s32 %s20, %s27
      %p191 = scmp.eq.s32.totalorder %s190, 0
      %s193 = sadd.s32 %s192, 1
      %s194 = scalar_select %p191, %s192, %s193
      %p197 = pneg %p191
      %p198 = scmp.eq.s32.totalorder %s20, 1
      %p199 = por %p197, %p198
      %p200 = scmp.ne.s32.totalorder %s192, %s195
      %p201 = scmp.eq.s32.totalorder %s20, 0
      %p202 = por %p200, %p201
      %p203 = scmp.ne.s32.totalorder %s192, %s195
      %p204 = scmp.eq.s32.totalorder %s25, 1
      %p205 = por %p203, %p204
      %p206 = scmp.ne.s32.totalorder %s195, %s196
      %p207 = scmp.eq.s32.totalorder %s25, 0
      %p208 = por %p206, %p207
      %p209 = scmp.ne.s32.totalorder %s195, %s196
      %p210 = scmp.eq.s32.totalorder %s26, 1
      %p211 = por %p209, %p210
      %p213 = scmp.ne.s32.totalorder %s196, %s212
      %p214 = scmp.eq.s32.totalorder %s26, 0
      %p215 = por %p213, %p214
      %p216 = scmp.le.s32.totalorder 1, %s20
      %p217 = scmp.lt.s32.totalorder %s20, 3
      %p218 = pnand %p216, %p217
      %p219 = pneg %p218
      // Predicated region
      $region9: #{tpu_custom_call.1} parent=5 // pred_check
        _
      $region10: #{tpu_custom_call.1} parent=5 // pred_check_branch
        %221 = sbr.rel (%p218) target = $region12
      $region11: #{tpu_custom_call.1} parent=5 // pred_region
        %s222 = ssub.s32 %s20, 1
        // Predicated region
        $region13: #{tpu_custom_call.1} parent=11 // pred_check
          %p223 = pneg %p93
        $region14: #{tpu_custom_call.1} parent=11 // pred_check_branch
          %225 = sbr.rel (%p223) target = $region16
        $region15: #{tpu_custom_call.1} parent=11 // pred_region
          _
        $region16: #{tpu_custom_call.1} parent=11 // pred_fallthru
          _
        // Predicated region
        $region17: #{tpu_custom_call.1} parent=11 // pred_check
          %p226 = pneg %p114
        $region18: #{tpu_custom_call.1} parent=11 // pred_check_branch
          %228 = sbr.rel (%p226) target = $region20
        $region19: #{tpu_custom_call.1} parent=11 // pred_region
          _
        $region20: #{tpu_custom_call.1} parent=11 // pred_fallthru
          _
        // Predicated region
        $region21: #{tpu_custom_call.1} parent=11 // pred_check
          %p229 = pneg %p135
        $region22: #{tpu_custom_call.1} parent=11 // pred_check_branch
          %231 = sbr.rel (%p229) target = $region24
        $region23: #{tpu_custom_call.1} parent=11 // pred_region
          _
        $region24: #{tpu_custom_call.1} parent=11 // pred_fallthru
          _
        // Predicated region
        $region25: #{tpu_custom_call.1} parent=11 // pred_check
          %p232 = pneg %p156
        $region26: #{tpu_custom_call.1} parent=11 // pred_check_branch
          %234 = sbr.rel (%p232) target = $region28
        $region27: #{tpu_custom_call.1} parent=11 // pred_region
          _
        $region28: #{tpu_custom_call.1} parent=11 // pred_fallthru
          _
      $region12: #{tpu_custom_call.1} parent=5 // pred_fallthru
        _
      %p235 = scmp.lt.s32.totalorder %s20, 2
      // Predicated region
      $region29: #{tpu_custom_call.1} parent=5 // pred_check
        %p236 = pneg %p235
      $region30: #{tpu_custom_call.1} parent=5 // pred_check_branch
        %238 = sbr.rel (%p236) target = $region32
      $region31: #{tpu_custom_call.1} parent=5 // pred_region
        // Predicated region
        $region33: #{tpu_custom_call.1} parent=31 // pred_check
          %p239 = pneg %p40
        $region34: #{tpu_custom_call.1} parent=31 // pred_check_branch
          %241 = sbr.rel (%p239) target = $region36
        $region35: #{tpu_custom_call.1} parent=31 // pred_region
          %s242 = smul.u32 2, %s20
          %p243 = scmp.lt.s32.totalorder %s242, 3
          %s244 = scalar_select %p243, %s242, 3
          %s245 = smul.addr %s244, 2
          %s246 = smul.addr %s245, 4
          %s247 = scalar_lea.vmem %s0, %s246
          %s248 = smul.u32 2, %s20
        $region36: #{tpu_custom_call.1} parent=31 // pred_fallthru
          _
        // Predicated region
        $region37: #{tpu_custom_call.1} parent=31 // pred_check
          %p249 = pneg %p66
        $region38: #{tpu_custom_call.1} parent=31 // pred_check_branch
          %251 = sbr.rel (%p249) target = $region40
        $region39: #{tpu_custom_call.1} parent=31 // pred_region
          %s252 = smul.u32 2, %s20
          %p253 = scmp.lt.s32.totalorder %s252, 3
          %s254 = scalar_select %p253, %s252, 3
          %s255 = smul.addr %s254, 4
          %s256 = scalar_lea.vmem %s1, %s255
          %s257 = smul.u32 2, %s20
        $region40: #{tpu_custom_call.1} parent=31 // pred_fallthru
          _
      $region32: #{tpu_custom_call.1} parent=5 // pred_fallthru
        _
      %p258 = scmp.le.s32.totalorder 1, %s20
      %p259 = scmp.lt.s32.totalorder %s20, 3
      %p260 = pnand %p258, %p259
      %p261 = pneg %p260
      // Predicated region
      $region41: #{tpu_custom_call.1} parent=5 // pred_check
        _
      $region42: #{tpu_custom_call.1} parent=5 // pred_check_branch
        %263 = sbr.rel (%p260) target = $region44
      $region43: #{tpu_custom_call.1} parent=5 // pred_region
        %s264 = ssub.s32 %s20, 1
        %s265 = smul.u32 2, %s25
        %p266 = scmp.lt.s32.totalorder %s265, 3
        %s267 = scalar_select %p266, %s265, 3
        %s268 = smul.addr %s267, 2
        %s269 = smul.addr %s268, 4
        %s270 = scalar_lea.vmem %s0, %s269
        %p271 = pneg %p46
        %p272 = pneg %p43
        %s273 = smul.u32 2, %s25
        %p274 = scmp.lt.s32.totalorder %s273, 3
        %s275 = scalar_select %p274, %s273, 3
        %s276 = smul.addr %s275, 4
        %s277 = scalar_lea.vmem %s1, %s276
        %p278 = pneg %p72
        %p279 = pneg %p69
        %p280 = pneg %p93
        %p281 = pneg %p90
        %p282 = pneg %p114
        %p283 = pneg %p111
        %p284 = pneg %p135
        %p285 = pneg %p132
        %p286 = pneg %p156
        %p287 = pneg %p153
        %p288 = pneg %p182
        %p289 = pneg %p179
        %s290 = sand.u32 %s169, 1
        %s291 = scalar_lea.sflag [#allocation3], %s290
        %s292 = sand.u32 %s169, 1
        %s293 = smul.addr %s292, 16
        %s294 = scalar_lea.vmem [#allocation2], %s293
        %p295 = pneg %p208
        %p296 = pneg %p205
        %s297 = sand.u32 %s195, 1
        %s298 = scalar_lea.sflag [#allocation5], %s297
        %s299 = sand.u32 %s195, 1
        %s300 = smul.addr %s299, 8
        %s301 = scalar_lea.vmem [#allocation4], %s300
        %s302 = smul.u32 2, %s25
        %p303 = scmp.lt.s32.totalorder %s302, 3
        %s304 = scalar_select %p303, %s302, 3
        %s305 = smul.addr %s304, 2
        %s306 = smul.addr %s305, 4
        %s307 = scalar_lea.vmem %s0, %s306
        %s308 = smul.u32 2, %s25
        %s309 = smul.u32 2, %s25
        %p310 = scmp.lt.s32.totalorder %s309, 3
        %s311 = scalar_select %p310, %s309, 3
        %s312 = smul.addr %s311, 4
        %s313 = scalar_lea.vmem %s1, %s312
        %s314 = smul.u32 2, %s25
        %s315 = smul.u32 2, %s25
        %s316 = smul.u32 2, %s25
        %v318 = vld [vmem:[%s313] sm:$0xf]
        %v319 = vld [vmem:[%s313 + $0x4] sm:$0xf]
        %v320 = vld [vmem:[%s307] sm:$0xf]
        %v321 = vld [vmem:[%s307 + $0x4] sm:$0xf]
        %v322 = vld [vmem:[%s307 + $0x8] sm:$0xf]
        %v323 = vld [vmem:[%s307 + $0xc] sm:$0xf]
        %v326 = vunpack.c.l.b16 %v320
        %v327 = vunpack.c.l.b16 %v321
        %v328 = vpack.c.b16 %v327, %v326
        %vm330 = vcmask 130048
        %v332 = vsel %vm330, %v318, 0
        %334 = vmatprep.subr.bf16.mxu0 0
        %335 = vmatpush1.bf16.msra.mxu0 0
        %336 = vmatprep.subr.bf16.mxu0 0
        %337 = vmatpush1.bf16.msra.mxu0 0
        %338 = vmatprep.subr.bf16.mxu0 0
        %339 = vmatpush1.bf16.msra.mxu0 0
        %340 = vmatprep.subr.bf16.mxu0 0
        %341 = vmatpush1.bf16.msra.mxu0 0
        %342 = vmatprep.subr.bf16.mxu0 0
        %343 = vmatpush1.bf16.msra.mxu0 0
        %344 = vmatprep.subr.bf16.mxu0 0
        %345 = vmatpush1.bf16.msra.mxu0 0
        %346 = vmatprep.subr.bf16.mxu0 0
        %347 = vmatpush1.bf16.msra.mxu0 0
        %348 = vmatprep.subr.bf16.mxu0 0
        %349 = vmatpush1.bf16.msra.mxu0 %v328
        %350 = vmatprep.subr.bf16.mxu0 0
        %351 = vmatpush2.bf16.msra.mxu0 0
        %352 = vmatprep.subr.bf16.mxu0 0
        %353 = vmatpush2.bf16.msra.mxu0 0
        %354 = vmatprep.subr.bf16.mxu0 0
        %355 = vmatpush2.bf16.msra.mxu0 0
        %356 = vmatprep.subr.bf16.mxu0 0
        %357 = vmatpush2.bf16.msra.mxu0 0
        %358 = vmatprep.subr.bf16.mxu0 0
        %359 = vmatpush2.bf16.msra.mxu0 0
        %360 = vmatprep.subr.bf16.mxu0 0
        %361 = vmatpush2.bf16.msra.mxu0 0
        %362 = vmatprep.subr.bf16.mxu0 0
        %363 = vmatpush2.bf16.msra.mxu0 0
        %364 = vmatprep.subr.bf16.mxu0 0
        %365 = vmatpush2.bf16.msra.mxu0 0
        %366 = vmatprep.mubr.bf16.mxu0 0
        %367 = vmatmul.mubr.bf16.gmra.mxu0 %v332
        %v368 = vpop.f32.mrf.mxu0
        %v369 = vadd.f32 0.0, %v368
        %v370 = vpop.f32.mrf.mxu0
        %v371 = vpop.f32.mrf.mxu0
        %v372 = vpop.f32.mrf.mxu0
        %373 = vdwg.mxu0
        %v376 = vunpack.c.l.b16 %v322
        %v377 = vunpack.c.l.b16 %v323
        %v378 = vpack.c.b16 %v377, %v376
        %v381 = vsel %vm330, %v319, 0
        %383 = vmatprep.subr.bf16.mxu0 0
        %384 = vmatpush1.bf16.msra.mxu0 0
        %385 = vmatprep.subr.bf16.mxu0 0
        %386 = vmatpush1.bf16.msra.mxu0 0
        %387 = vmatprep.subr.bf16.mxu0 0
        %388 = vmatpush1.bf16.msra.mxu0 0
        %389 = vmatprep.subr.bf16.mxu0 0
        %390 = vmatpush1.bf16.msra.mxu0 0
        %391 = vmatprep.subr.bf16.mxu0 0
        %392 = vmatpush1.bf16.msra.mxu0 0
        %393 = vmatprep.subr.bf16.mxu0 0
        %394 = vmatpush1.bf16.msra.mxu0 0
        %395 = vmatprep.subr.bf16.mxu0 0
        %396 = vmatpush1.bf16.msra.mxu0 0
        %397 = vmatprep.subr.bf16.mxu0 0
        %398 = vmatpush1.bf16.msra.mxu0 %v378
        %399 = vmatprep.subr.bf16.mxu0 0
        %400 = vmatpush2.bf16.msra.mxu0 0
        %401 = vmatprep.subr.bf16.mxu0 0
        %402 = vmatpush2.bf16.msra.mxu0 0
        %403 = vmatprep.subr.bf16.mxu0 0
        %404 = vmatpush2.bf16.msra.mxu0 0
        %405 = vmatprep.subr.bf16.mxu0 0
        %406 = vmatpush2.bf16.msra.mxu0 0
        %407 = vmatprep.subr.bf16.mxu0 0
        %408 = vmatpush2.bf16.msra.mxu0 0
        %409 = vmatprep.subr.bf16.mxu0 0
        %410 = vmatpush2.bf16.msra.mxu0 0
        %411 = vmatprep.subr.bf16.mxu0 0
        %412 = vmatpush2.bf16.msra.mxu0 0
        %413 = vmatprep.subr.bf16.mxu0 0
        %414 = vmatpush2.bf16.msra.mxu0 0
        %415 = vmatprep.mubr.bf16.mxu0 0
        %416 = vmatmul.mubr.bf16.gmra.mxu0 %v381
        %v417 = vpop.f32.mrf.mxu0
        %v418 = vadd.f32 0.0, %v417
        %v419 = vpop.f32.mrf.mxu0
        %v420 = vpop.f32.mrf.mxu0
        %v421 = vpop.f32.mrf.mxu0
        %422 = vdwg.mxu0
        %v423 = vpack.c.bf16 %v418, %v369
        %v424 = vld [vmem:[%s2] sm:$0xf]
        %v425 = vld [vmem:[%s2 + $0x4] sm:$0xf]
        %v426 = vld [vmem:[%s2 + $0x8] sm:$0xf]
        %v427 = vld [vmem:[%s2 + $0xc] sm:$0xf]
        %v428 = vld [vmem:[%s3] sm:$0x1]
        %v430 = vlaneseq
        %v431 = vshrl.u32 %v430, 7
        %v432 = vsub.s32 0, %v431
        %v433 = vrot.slane %v428, %v432
        %v439 = vunpack.c.l.b16 %v424
        %v440 = vunpack.c.l.b16 %v425
        %v441 = vunpack.c.l.b16 %v426
        %v442 = vunpack.c.l.b16 %v427
        %v443 = vpack.c.b16 %v440, %v439
        %v444 = vpack.c.b16 %v442, %v441
        %vm447 = vcmask 261120
        %v449 = vsel %vm447, %v423, 0
        %451 = vmatprep.subr.bf16.mxu0 0
        %452 = vmatpush1.bf16.msra.mxu0 0
        %453 = vmatprep.subr.bf16.mxu0 0
        %454 = vmatpush1.bf16.msra.mxu0 0
        %455 = vmatprep.subr.bf16.mxu0 0
        %456 = vmatpush1.bf16.msra.mxu0 0
        %457 = vmatprep.subr.bf16.mxu0 0
        %458 = vmatpush1.bf16.msra.mxu0 0
        %459 = vmatprep.subr.bf16.mxu0 0
        %460 = vmatpush1.bf16.msra.mxu0 0
        %461 = vmatprep.subr.bf16.mxu0 0
        %462 = vmatpush1.bf16.msra.mxu0 0
        %463 = vmatprep.subr.bf16.mxu0 0
        %464 = vmatpush1.bf16.msra.mxu0 %v444
        %465 = vmatprep.subr.bf16.mxu0 0
        %466 = vmatpush1.bf16.msra.mxu0 %v443
        %467 = vmatprep.subr.bf16.mxu0 0
        %468 = vmatpush2.bf16.msra.mxu0 0
        %469 = vmatprep.subr.bf16.mxu0 0
        %470 = vmatpush2.bf16.msra.mxu0 0
        %471 = vmatprep.subr.bf16.mxu0 0
        %472 = vmatpush2.bf16.msra.mxu0 0
        %473 = vmatprep.subr.bf16.mxu0 0
        %474 = vmatpush2.bf16.msra.mxu0 0
        %475 = vmatprep.subr.bf16.mxu0 0
        %476 = vmatpush2.bf16.msra.mxu0 0
        %477 = vmatprep.subr.bf16.mxu0 0
        %478 = vmatpush2.bf16.msra.mxu0 0
        %479 = vmatprep.subr.bf16.mxu0 0
        %480 = vmatpush2.bf16.msra.mxu0 0
        %481 = vmatprep.subr.bf16.mxu0 0
        %482 = vmatpush2.bf16.msra.mxu0 0
        %483 = vmatprep.mubr.bf16.mxu0 0
        %484 = vmatmul.mubr.bf16.gmra.mxu0 %v449
        %v485 = vpop.f32.mrf.mxu0
        %v486 = vadd.f32 %v433, %v485
        %v487 = vpop.f32.mrf.mxu0
        %v488 = vpop.f32.mrf.mxu0
        %v489 = vadd.f32 %v433, %v488
        %v490 = vpop.f32.mrf.mxu0
        %491 = vdwg.mxu0
        %492 = vmax.xlane.f32.xlu0 %v486
        %v493 = vpop.xlane.xlu0 %492
        %494 = vmax.xlane.f32.xlu0 %v489
        %v495 = vpop.xlane.xlu0 %494
        %v496 = vsub.f32 %v486, %v493
        %v497 = vsub.f32 %v489, %v495
        %v498 = vmul.f32 %v496, 1.442695
        %v499 = vpow.pop %v498
        %v500 = vmul.f32 %v497, 1.442695
        %v501 = vpow.pop %v500
        %502 = vadd.xlane.f32.xlu0 %v499
        %v503 = vpop.xlane.xlu0 %502
        %504 = vadd.xlane.f32.xlu0 %v501
        %v505 = vpop.xlane.xlu0 %504
        %v506 = vrcp.pop %v503
        %v507 = vmul.f32 %v499, %v506
        %v508 = vrcp.pop %v505
        %v509 = vmul.f32 %v501, %v508
        %v510 = vpack.c.bf16 %v509, %v507
        %v511 = vld [vmem:[%s4] sm:$0xf]
        %v512 = vld [vmem:[%s4 + $0x4] sm:$0xf]
        %v513 = vld [vmem:[%s4 + $0x8] sm:$0xf]
        %v514 = vld [vmem:[%s4 + $0xc] sm:$0xf]
        %v515 = vld [vmem:[%s4 + $0x10] sm:$0xf]
        %v516 = vld [vmem:[%s4 + $0x14] sm:$0xf]
        %v517 = vld [vmem:[%s4 + $0x18] sm:$0xf]
        %v518 = vld [vmem:[%s4 + $0x1c] sm:$0xf]
        %v519 = vld [vmem:[%s4 + $0x20] sm:$0xf]
        %v520 = vld [vmem:[%s4 + $0x24] sm:$0xf]
        %v521 = vld [vmem:[%s4 + $0x28] sm:$0xf]
        %v522 = vld [vmem:[%s4 + $0x2c] sm:$0xf]
        %v523 = vld [vmem:[%s4 + $0x30] sm:$0xf]
        %v524 = vld [vmem:[%s4 + $0x34] sm:$0xf]
        %v525 = vld [vmem:[%s4 + $0x38] sm:$0xf]
        %v526 = vld [vmem:[%s4 + $0x3c] sm:$0xf]
        %v527 = vld [vmem:[%s5] sm:$0x1]
        %v529 = vlaneseq
        %v530 = vshrl.u32 %v529, 7
        %v531 = vsub.s32 0, %v530
        %v532 = vrot.slane %v527, %v531
        %v550 = vunpack.c.l.b16 %v511
        %v551 = vunpack.c.l.b16 %v512
        %v552 = vunpack.c.l.b16 %v513
        %v553 = vunpack.c.l.b16 %v514
        %v554 = vunpack.c.l.b16 %v515
        %v555 = vunpack.c.l.b16 %v516
        %v556 = vunpack.c.l.b16 %v517
        %v557 = vunpack.c.l.b16 %v518
        %v558 = vunpack.c.l.b16 %v519
        %v559 = vunpack.c.l.b16 %v520
        %v560 = vunpack.c.l.b16 %v521
        %v561 = vunpack.c.l.b16 %v522
        %v562 = vunpack.c.l.b16 %v523
        %v563 = vunpack.c.l.b16 %v524
        %v564 = vunpack.c.l.b16 %v525
        %v565 = vunpack.c.l.b16 %v526
        %v566 = vpack.c.b16 %v551, %v550
        %v567 = vpack.c.b16 %v553, %v552
        %v568 = vpack.c.b16 %v555, %v554
        %v569 = vpack.c.b16 %v557, %v556
        %v570 = vpack.c.b16 %v559, %v558
        %v571 = vpack.c.b16 %v561, %v560
        %v572 = vpack.c.b16 %v563, %v562
        %v573 = vpack.c.b16 %v565, %v564
        %582 = vmatprep.subr.bf16.mxu0 0
        %583 = vmatpush1.bf16.msra.mxu0 %v573
        %584 = vmatprep.subr.bf16.mxu0 0
        %585 = vmatpush1.bf16.msra.mxu0 %v572
        %586 = vmatprep.subr.bf16.mxu0 0
        %587 = vmatpush1.bf16.msra.mxu0 %v571
        %588 = vmatprep.subr.bf16.mxu0 0
        %589 = vmatpush1.bf16.msra.mxu0 %v570
        %590 = vmatprep.subr.bf16.mxu0 0
        %591 = vmatpush1.bf16.msra.mxu0 %v569
        %592 = vmatprep.subr.bf16.mxu0 0
        %593 = vmatpush1.bf16.msra.mxu0 %v568
        %594 = vmatprep.subr.bf16.mxu0 0
        %595 = vmatpush1.bf16.msra.mxu0 %v567
        %596 = vmatprep.subr.bf16.mxu0 0
        %597 = vmatpush1.bf16.msra.mxu0 %v566
        %598 = vmatprep.subr.bf16.mxu0 0
        %599 = vmatpush2.bf16.msra.mxu0 0
        %600 = vmatprep.subr.bf16.mxu0 0
        %601 = vmatpush2.bf16.msra.mxu0 0
        %602 = vmatprep.subr.bf16.mxu0 0
        %603 = vmatpush2.bf16.msra.mxu0 0
        %604 = vmatprep.subr.bf16.mxu0 0
        %605 = vmatpush2.bf16.msra.mxu0 0
        %606 = vmatprep.subr.bf16.mxu0 0
        %607 = vmatpush2.bf16.msra.mxu0 0
        %608 = vmatprep.subr.bf16.mxu0 0
        %609 = vmatpush2.bf16.msra.mxu0 0
        %610 = vmatprep.subr.bf16.mxu0 0
        %611 = vmatpush2.bf16.msra.mxu0 0
        %612 = vmatprep.subr.bf16.mxu0 0
        %613 = vmatpush2.bf16.msra.mxu0 0
        %614 = vmatprep.mubr.bf16.mxu0 0
        %615 = vmatmul.mubr.bf16.gmra.mxu0 %v510
        %v616 = vpop.f32.mrf.mxu0
        %v617 = vadd.f32 %v532, %v616
        %v618 = vpop.f32.mrf.mxu0
        %v619 = vpop.f32.mrf.mxu0
        %v620 = vadd.f32 %v532, %v619
        %v621 = vpop.f32.mrf.mxu0
        %622 = vdwg.mxu0
        %v623 = vadd.f32 %v369, %v617
        %v624 = vadd.f32 %v418, %v620
        %625 = vst [vmem:[%s294] sm:$0xff] %v486
        %626 = vst [vmem:[%s294 + $0x8] sm:$0xff] %v489
        %v627 = vpack.c.bf16 %v623, %v623
        %v628 = vpack.c.bf16 %v624, %v624
        %vm629 = vcmask 257024
        %630 = vst.msk [vmem:[%s301] sm:$0xf] %vm629, %v627
        %631 = vst.msk [vmem:[%s301 + $0x4] sm:$0xf] %vm629, %v628
        %s632 = sand.u32 %s169, 1
        %s633 = scalar_lea.sflag [#allocation3], %s632
        %s634 = sand.u32 %s169, 1
        %s635 = smul.addr %s634, 16
        %s636 = scalar_lea.vmem [#allocation2], %s635
        %s637 = sand.u32 %s195, 1
        %s638 = scalar_lea.sflag [#allocation5], %s637
        %s639 = sand.u32 %s195, 1
        %s640 = smul.addr %s639, 8
        %s641 = scalar_lea.vmem [#allocation4], %s640
        // Predicated region
        $region45: #{tpu_custom_call.1} parent=43 // pred_check
          %p642 = pneg %p179
        $region46: #{tpu_custom_call.1} parent=43 // pred_check_branch
          %644 = sbr.rel (%p642) target = $region48
        $region47: #{tpu_custom_call.1} parent=43 // pred_region
          %s645 = smul.u32 2, %s25
          %s647 = ssub.s32 256, 256
          %648 = vsyncadd %s633, %s647
          %s649 = smul.addr %s645, 128
          %s650 = scalar_lea.hbm %s6, %s649
          %s651 = sshll.u32 %s636, 4
          %s652 = int_to_ptr.vmem [resolvable:$true] %s651
          %657 = dma.vmem_to_hbm [thread:$0]  %s652, 256, %s650, %s633, 128, 128, 8
        $region48: #{tpu_custom_call.1} parent=43 // pred_fallthru
          _
        // Predicated region
        $region49: #{tpu_custom_call.1} parent=43 // pred_check
          %p658 = pneg %p205
        $region50: #{tpu_custom_call.1} parent=43 // pred_check_branch
          %660 = sbr.rel (%p658) target = $region52
        $region51: #{tpu_custom_call.1} parent=43 // pred_region
          %s661 = smul.u32 2, %s25
          %s663 = ssub.s32 128, 128
          %664 = vsyncadd %s638, %s663
          %s665 = smul.addr %s661, 64
          %s666 = scalar_lea.hbm %s7, %s665
          %s667 = sshll.u32 %s641, 4
          %s668 = int_to_ptr.vmem [resolvable:$true] %s667
          %673 = dma.vmem_to_hbm [thread:$0]  %s668, 128, %s666, %s638, 64, 64, 4
        $region52: #{tpu_custom_call.1} parent=43 // pred_fallthru
          _
      $region44: #{tpu_custom_call.1} parent=5 // pred_fallthru
        _
      %p674 = scmp.le.s32.totalorder 2, %s20
      // Predicated region
      $region53: #{tpu_custom_call.1} parent=5 // pred_check
        %p675 = pneg %p674
      $region54: #{tpu_custom_call.1} parent=5 // pred_check_branch
        %677 = sbr.rel (%p675) target = $region56
      $region55: #{tpu_custom_call.1} parent=5 // pred_region
        %s678 = ssub.s32 %s20, 2
        // Predicated region
        $region57: #{tpu_custom_call.1} parent=55 // pred_check
          %p679 = pneg %p185
        $region58: #{tpu_custom_call.1} parent=55 // pred_check_branch
          %681 = sbr.rel (%p679) target = $region60
        $region59: #{tpu_custom_call.1} parent=55 // pred_region
          %s682 = sand.u32 %s170, 1
          %s683 = scalar_lea.sflag [#allocation3], %s682
          %s684 = sand.u32 %s170, 1
          %s685 = smul.addr %s684, 16
          %s686 = scalar_lea.vmem [#allocation2], %s685
          %687 = dma.done %s683, 256
        $region60: #{tpu_custom_call.1} parent=55 // pred_fallthru
          _
        // Predicated region
        $region61: #{tpu_custom_call.1} parent=55 // pred_check
          %p688 = pneg %p211
        $region62: #{tpu_custom_call.1} parent=55 // pred_check_branch
          %690 = sbr.rel (%p688) target = $region64
        $region63: #{tpu_custom_call.1} parent=55 // pred_region
          %s691 = sand.u32 %s196, 1
          %s692 = scalar_lea.sflag [#allocation5], %s691
          %s693 = sand.u32 %s196, 1
          %s694 = smul.addr %s693, 8
          %s695 = scalar_lea.vmem [#allocation4], %s694
          %696 = dma.done %s692, 128
        $region64: #{tpu_custom_call.1} parent=55 // pred_fallthru
          _
      $region56: #{tpu_custom_call.1} parent=5 // pred_fallthru
        _
    $region6: #{tpu_custom_call.1} parent=1 // loop_footer
      %s24 = sadd.s32 1, %s20
    $region7: #{tpu_custom_call.1} parent=1 // loop_footer_branch
      %19 = sbr.rel target = $region3
    $region8: #{tpu_custom_call.1} parent=1 // loop_exit
      _
    %697 = vsyncpa [#allocation3], 1
    %s698 = scalar_lea.sflag [#allocation3], 1
    %699 = vsyncpa %s698, 1
    %700 = vsyncpa [#allocation5], 1
    %s701 = scalar_lea.sflag [#allocation5], 1
    %702 = vsyncpa %s701, 1

</llo_original>
